<compile_context>
chip_gen: v6e
topology: v6e:2x2x1
jax: 0.10.0
libtpu: 0.0.40
codegen_flags: <defaults>
</compile_context>

<pallas_src>
import jax
import jax.numpy as jnp
from jax import lax
from jax.experimental import pallas as pl
from jax.experimental.pallas import tpu as pltpu

N_EMBD = 384          # n_embd in the PyTorch module
BLOCK_SIZE = 256      # max sequence length (tril buffer size); T <= BLOCK_SIZE


def _head_kernel(x_ref, wqkv_ref, o_ref):
    # x_ref: (Bb, T, C) bf16   wqkv_ref: (C, 3H) bf16 = [wk | wq*scale | wv]   o_ref: (Bb, T, H) f32
    Bb, T, C = x_ref.shape
    H = wqkv_ref.shape[1] // 3

    # --- Fused projections: one (Bb*T, C) @ (C, 3H) MXU matmul, f32 accumulation. ---
    x2 = x_ref[...].reshape(Bb * T, C)                                    # bf16
    kqv = jnp.dot(x2, wqkv_ref[...], preferred_element_type=jnp.float32)  # (Bb*T, 3H) f32
    k = kqv[:, 0 * H:1 * H].reshape(Bb, T, H).astype(jnp.bfloat16)
    q = kqv[:, 1 * H:2 * H].reshape(Bb, T, H).astype(jnp.bfloat16)        # 1/sqrt(C) folded into wq
    v = kqv[:, 2 * H:3 * H].reshape(Bb, T, H).astype(jnp.bfloat16)

    # --- Attention scores: batched q @ k^T via dot_general (no explicit k.T copy). ---
    wei = lax.dot_general(q, k, (((2,), (2,)), ((0,), (0,))),
                          preferred_element_type=jnp.float32)             # (Bb, T, T) f32

    # Causal mask from a single (T, T) comparison, broadcast over the batch block.
    row = lax.broadcasted_iota(jnp.int32, (T, T), 0)
    col = lax.broadcasted_iota(jnp.int32, (T, T), 1)
    causal = col <= row                                                   # (T, T) bool
    wei = jnp.where(causal[None, :, :], wei, -jnp.inf)

    # Softmax (f32).  Keep probabilities unnormalized; normalize after p@v so the
    # elementwise scaling touches (Bb, T, H) instead of (Bb, T, T).
    wei = wei - jnp.max(wei, axis=-1, keepdims=True)
    p = jnp.exp(wei)
    l = jnp.sum(p, axis=-1, keepdims=True)                                # (Bb, T, 1)

    # (Dropout is identity in eval mode.)
    out = lax.dot_general(p.astype(jnp.bfloat16), v, (((2,), (1,)), ((0,), (0,))),
                          preferred_element_type=jnp.float32)             # (Bb, T, H)
    out = out * pl.reciprocal(l, approx=False)                            # exact divide (tiny: (Bb,T,1))
    o_ref[...] = out.astype(o_ref.dtype)


def _pick_batch_block(B):
    """Largest Bb in {8,4,2,1} dividing B while keeping the grid length >= 2.

    Grid >= 2 keeps both v7x TensorCores busy under dimension_semantics=("parallel",)
    and gives the pipeliner something to overlap.  Only B == 1 yields grid=(1,).
    """
    for bb in (8, 4, 2, 1):
        if B % bb == 0 and B // bb >= 2:
            return bb
    return 1


@jax.jit
def head_forward(x, w_key, w_query, w_value):
    """x: (B, T, C) f32; w_*: (C, H) f32 (transposed nn.Linear weights). Returns (B, T, H) f32."""
    B, T, C = x.shape
    assert C == N_EMBD and T <= BLOCK_SIZE
    H = w_key.shape[1]

    # Fold the C**-0.5 attention scale into the query weight and fuse [k | q | v] -> (C, 3H).
    scale = jnp.float32(1.0 / (C ** 0.5))
    w_qkv = jnp.concatenate([w_key, w_query * scale, w_value], axis=1).astype(jnp.bfloat16)
    x_bf = x.astype(jnp.bfloat16)

    Bb = _pick_batch_block(B)
    grid = (B // Bb,)

    x_spec = pl.BlockSpec((Bb, T, C), lambda b: (b, 0, 0))
    w_spec = pl.BlockSpec((C, 3 * H), lambda b: (0, 0))
    o_spec = pl.BlockSpec((Bb, T, H), lambda b: (b, 0, 0))

    return pl.pallas_call(
        _head_kernel,
        out_shape=jax.ShapeDtypeStruct((B, T, H), jnp.float32),
        grid_spec=pltpu.PrefetchScalarGridSpec(
            num_scalar_prefetch=0,
            grid=grid,
            in_specs=[x_spec, w_spec],
            out_specs=o_spec,
        ),
        compiler_params=pltpu.CompilerParams(
            dimension_semantics=("parallel",),
            vmem_limit_bytes=64 << 20,   # v5e's 16 MiB default scoped VMEM is too tight at Bb=8, T=256
        ),
    )(x_bf, w_qkv)


def _reference(x, w_key, w_query, w_value):
    B, T, C = x.shape
    k = x @ w_key
    q = x @ w_query
    v = x @ w_value
    wei = (q @ jnp.swapaxes(k, -2, -1)) * (C ** -0.5)
    mask = jnp.tril(jnp.ones((T, T), dtype=bool))
    wei = jnp.where(mask, wei, -jnp.inf)
    wei = jax.nn.softmax(wei, axis=-1)
    return wei @ v


if __name__ == "__main__":
    key = jax.random.PRNGKey(0)
    k_x, k_k, k_q, k_v = jax.random.split(key, 4)

    B, T, C = 2, 16, N_EMBD
    head_size = 64

    x = jax.random.normal(k_x, (B, T, C), dtype=jnp.float32)
    # nn.Linear(n_embd, head_size, bias=False) has weight (head_size, n_embd);
    # we keep the transposed (n_embd, head_size) layout for x @ W.
    bound = 1.0 / (C ** 0.5)
    w_key = jax.random.uniform(k_k, (C, head_size), jnp.float32, -bound, bound)
    w_query = jax.random.uniform(k_q, (C, head_size), jnp.float32, -bound, bound)
    w_value = jax.random.uniform(k_v, (C, head_size), jnp.float32, -bound, bound)

    out = head_forward(x, w_key, w_query, w_value)
    jax.block_until_ready(out)

    ref = _reference(x, w_key, w_query, w_value)
    assert out.shape == (B, T, head_size)
    # Tolerance loosened for bf16 MXU inputs (f32 accumulation / f32 softmax).
    assert jnp.allclose(out, ref, atol=2e-2, rtol=2e-2), float(jnp.max(jnp.abs(out - ref)))

    print("KERNEL_OK")
</pallas_src>

<mosaic_0001>
module attributes {stable_mosaic.version = 11 : i64} {
  func.func @_head_kernel(%arg0: i32, %arg1: memref<1x16x384xbf16, #tpu.memory_space<vmem>>, %arg2: memref<384x192xbf16, #tpu.memory_space<vmem>>, %arg3: memref<1x16x64xf32, #tpu.memory_space<vmem>>) attributes {dimension_semantics = [#tpu.dimension_semantics<parallel>], iteration_bounds = array<i64: 2>, scalar_prefetch = 0 : i64, scratch_operands = 0 : i64, tpu.core_type = #tpu.core_type<tc>, window_params = [{transform_indices = @transform_0, window_bounds = array<i64: 1, 16, 384>}, {pipeline_mode = #tpu.pipeline_mode<synchronous>, transform_indices = @transform_1, window_bounds = array<i64: 384, 192>}, {transform_indices = @transform_2, window_bounds = array<i64: 1, 16, 64>}]} {
    %c0 = arith.constant 0 : index
    %c0_0 = arith.constant 0 : index
    %c0_1 = arith.constant 0 : index
    %0 = vector.load %arg1[%c0, %c0_0, %c0_1] : memref<1x16x384xbf16, #tpu.memory_space<vmem>>, vector<1x16x384xbf16>
    %1 = vector.shape_cast %0 : vector<1x16x384xbf16> to vector<16x384xbf16>
    %c0_2 = arith.constant 0 : index
    %c0_3 = arith.constant 0 : index
    %2 = vector.load %arg2[%c0_2, %c0_3] : memref<384x192xbf16, #tpu.memory_space<vmem>>, vector<384x192xbf16>
    %cst = arith.constant dense<0.000000e+00> : vector<16x192xf32>
    %3 = tpu.matmul %1, %2, %cst {dimension_numbers = #tpu.dot_dimension_numbers<[1], [0], [0], [1], [0, 0, 1, 1], [], []>} : vector<16x384xbf16>, vector<384x192xbf16>, vector<16x192xf32> -> vector<16x192xf32>
    %4 = vector.extract_strided_slice %3 {offsets = [0, 0], sizes = [16, 64], strides = [1, 1]} : vector<16x192xf32> to vector<16x64xf32>
    %5 = vector.shape_cast %4 : vector<16x64xf32> to vector<1x16x64xf32>
    %6 = arith.truncf %5 : vector<1x16x64xf32> to vector<1x16x64xbf16>
    %7 = vector.extract_strided_slice %3 {offsets = [0, 64], sizes = [16, 64], strides = [1, 1]} : vector<16x192xf32> to vector<16x64xf32>
    %8 = vector.shape_cast %7 : vector<16x64xf32> to vector<1x16x64xf32>
    %9 = arith.truncf %8 : vector<1x16x64xf32> to vector<1x16x64xbf16>
    %10 = vector.extract_strided_slice %3 {offsets = [0, 128], sizes = [16, 64], strides = [1, 1]} : vector<16x192xf32> to vector<16x64xf32>
    %11 = vector.shape_cast %10 : vector<16x64xf32> to vector<1x16x64xf32>
    %12 = arith.truncf %11 : vector<1x16x64xf32> to vector<1x16x64xbf16>
    %cst_4 = arith.constant dense<0.000000e+00> : vector<1x16x16xf32>
    %13 = tpu.matmul %9, %6, %cst_4 {dimension_numbers = #tpu.dot_dimension_numbers<[2], [2], [1], [1], [0, 0, 0, 1, 1, 1], [0], [0]>} : vector<1x16x64xbf16>, vector<1x16x64xbf16>, vector<1x16x16xf32> -> vector<1x16x16xf32>
    %14 = tpu.iota {dimensions = array<i32: 0>} : vector<16x16xi32>
    %15 = tpu.iota {dimensions = array<i32: 1>} : vector<16x16xi32>
    %16 = arith.cmpi sle, %15, %14 : vector<16x16xi32>
    %17 = vector.shape_cast %16 : vector<16x16xi1> to vector<1x16x16xi1>
    %cst_5 = arith.constant 0xFF800000 : f32
    %18 = vector.broadcast %cst_5 : f32 to vector<1x16x16xf32>
    %19 = arith.select %17, %13, %18 : vector<1x16x16xi1>, vector<1x16x16xf32>
    %cst_6 = arith.constant dense<0xFF800000> : vector<1x16xf32>
    %20 = vector.multi_reduction <maximumf>, %19, %cst_6 [2] : vector<1x16x16xf32> to vector<1x16xf32>
    %21 = vector.shape_cast %20 : vector<1x16xf32> to vector<1x16x1xf32>
    %22 = vector.broadcast %21 : vector<1x16x1xf32> to vector<1x16x16xf32>
    %23 = arith.subf %19, %22 : vector<1x16x16xf32>
    %24 = math.exp %23 : vector<1x16x16xf32>
    %cst_7 = arith.constant dense<0.000000e+00> : vector<1x16xf32>
    %25 = vector.multi_reduction <add>, %24, %cst_7 [2] : vector<1x16x16xf32> to vector<1x16xf32>
    %26 = vector.shape_cast %25 : vector<1x16xf32> to vector<1x16x1xf32>
    %27 = arith.truncf %24 : vector<1x16x16xf32> to vector<1x16x16xbf16>
    %cst_8 = arith.constant dense<0.000000e+00> : vector<1x16x64xf32>
    %28 = tpu.matmul %27, %12, %cst_8 {dimension_numbers = #tpu.dot_dimension_numbers<[2], [1], [1], [2], [0, 0, 0, 1, 1, 2], [0], [0]>} : vector<1x16x16xbf16>, vector<1x16x64xbf16>, vector<1x16x64xf32> -> vector<1x16x64xf32>
    %29 = tpu.reciprocal %26 : vector<1x16x1xf32> -> vector<1x16x1xf32>
    %30 = vector.broadcast %29 : vector<1x16x1xf32> to vector<1x16x64xf32>
    %31 = arith.mulf %28, %30 : vector<1x16x64xf32>
    %c0_9 = arith.constant 0 : index
    %c0_10 = arith.constant 0 : index
    %c0_11 = arith.constant 0 : index
    %32 = vector.load %arg3[%c0_9, %c0_10, %c0_11] : memref<1x16x64xf32, #tpu.memory_space<vmem>>, vector<1x16x64xf32>
    tpu.vector_store %arg3[%c0_9, %c0_10, %c0_11], %31 {strides = array<i32>} : memref<1x16x64xf32, #tpu.memory_space<vmem>>, vector<1x16x64xf32>,
    return
  }
  func.func @transform_0(%arg0: i32) -> (i32, i32, i32) {
    %c0_i32 = arith.constant 0 : i32
    %c0_i32_0 = arith.constant 0 : i32
    %c0_i32_1 = arith.constant 0 : i32
    return %arg0, %c0_i32, %c0_i32_0 : i32, i32, i32
  }
  func.func @transform_1(%arg0: i32) -> (i32, i32) {
    %c0_i32 = arith.constant 0 : i32
    %c0_i32_0 = arith.constant 0 : i32
    %c0_i32_1 = arith.constant 0 : i32
    return %c0_i32, %c0_i32_0 : i32, i32
  }
  func.func @transform_2(%arg0: i32) -> (i32, i32, i32) {
    %c0_i32 = arith.constant 0 : i32
    %c0_i32_0 = arith.constant 0 : i32
    %c0_i32_1 = arith.constant 0 : i32
    return %arg0, %c0_i32, %c0_i32_0 : i32, i32, i32
  }
}

</mosaic_0001>

<llo_original>
// kernel: head_forward.1
$region0: #{head_forward.1}
  #allocation0 [shape = 'u32[]', space=smem, size = 0x4, offset = 0x4, fixed_abs, tag = 'smem constant byte address 0x4 - core index']
  #allocation1 [shape = 'u32[144,128]{1,0:T(1,128)}', space=vmem, size = 0x12000, scoped, tag = 'internal scratch']
  %s0 = inlined_call_operand.vmem [shape: bf16[2,16,384], index: 0, kind: input, shape index: {}]
  %s1 = inlined_call_operand.vmem [shape: bf16[384,192], index: 1, kind: input, shape index: {}]
  %s2 = inlined_call_operand.hbm [shape: f32[2,16,64], index: 2, kind: output, shape index: {}]
  %s3 = sld [smem:[#allocation0]]
  $region41: #{head_forward.1} parent=0
    _
  %s5 = ssub.s32 1, %s3
  %s6 = scalar_select 0, %s5, %s3
  $region1: #{head_forward.1} parent=0
    #allocation2 [shape = 'u8[16384]{0}', space=vmem, size = 0x4000, scoped, tag = 'output window, operand 0']
    #allocation3 [shape = 's32[2]{0}', space=sflag, size = 0x8, scoped, tag = 'scoped memory for head_forward.1']
    %7 = vsyncpa [#allocation3], 0
    %s8 = scalar_lea.sflag [#allocation3], 1
    %9 = vsyncpa %s8, 0
    loop: start=0, step=1, limit=4
    $region2: #{head_forward.1} parent=1 // loop_pre_header
      _
    $region3: #{head_forward.1} parent=1 // loop_header
      %s11 = sphi 0, %s15
      %p12 = scmp.ge.s32.totalorder %s11, 4
      %s21 = sphi 0, %s23
      %s24 = sphi 0, %s21
      %s25 = sphi 0, %s24
      %s41 = sphi 0, %s25
      %s45 = sphi 0, %s45
      %s47 = sphi 0, %s45
      %s48 = sphi 0, %s47
      %s62 = sphi 0, %s48
      %s68 = sphi 0, %s70
      %s71 = sphi 0, %s68
      %s72 = sphi 0, %s71
      %s88 = sphi 0, %s72
    $region4: #{head_forward.1} parent=1 // loop_header_branch
      %14 = sbr.rel (%p12) target = $region8
    $region5: #{head_forward.1} parent=1 // loop_body
      %s16 = ssub.s32 %s11, 1
      %s17 = ssub.s32 %s11, 2
      %s18 = sadd.s32 %s11, 1
      %s19 = ssub.s32 %s11, %s18
      %p20 = scmp.eq.s32.totalorder %s19, 0
      %s22 = sadd.s32 %s21, 1
      %s23 = scalar_select %p20, %s21, %s22
      %p26 = pneg %p20
      %p27 = scmp.eq.s32.totalorder %s11, 1
      %p28 = por %p26, %p27
      %p29 = scmp.ne.s32.totalorder %s21, %s24
      %p30 = scmp.eq.s32.totalorder %s11, 0
      %p31 = por %p29, %p30
      %p32 = scmp.ne.s32.totalorder %s21, %s24
      %p33 = scmp.eq.s32.totalorder %s16, 1
      %p34 = por %p32, %p33
      %p35 = scmp.ne.s32.totalorder %s24, %s25
      %p36 = scmp.eq.s32.totalorder %s16, 0
      %p37 = por %p35, %p36
      %p38 = scmp.ne.s32.totalorder %s24, %s25
      %p39 = scmp.eq.s32.totalorder %s17, 1
      %p40 = por %p38, %p39
      %p42 = scmp.ne.s32.totalorder %s25, %s41
      %p43 = scmp.eq.s32.totalorder %s17, 0
      %p44 = por %p42, %p43
      %s46 = sadd.s32 %s45, 1
      %p49 = scmp.eq.s32.totalorder %s11, 1
      %p50 = scmp.ne.s32.totalorder %s45, %s47
      %p51 = scmp.eq.s32.totalorder %s11, 0
      %p52 = por %p50, %p51
      %p53 = scmp.ne.s32.totalorder %s45, %s47
      %p54 = scmp.eq.s32.totalorder %s16, 1
      %p55 = por %p53, %p54
      %p56 = scmp.ne.s32.totalorder %s47, %s48
      %p57 = scmp.eq.s32.totalorder %s16, 0
      %p58 = por %p56, %p57
      %p59 = scmp.ne.s32.totalorder %s47, %s48
      %p60 = scmp.eq.s32.totalorder %s17, 1
      %p61 = por %p59, %p60
      %p63 = scmp.ne.s32.totalorder %s48, %s62
      %p64 = scmp.eq.s32.totalorder %s17, 0
      %p65 = por %p63, %p64
      %s66 = ssub.s32 %s11, %s18
      %p67 = scmp.eq.s32.totalorder %s66, 0
      %s69 = sadd.s32 %s68, 1
      %s70 = scalar_select %p67, %s68, %s69
      %p73 = pneg %p67
      %p74 = scmp.eq.s32.totalorder %s11, 1
      %p75 = por %p73, %p74
      %p76 = scmp.ne.s32.totalorder %s68, %s71
      %p77 = scmp.eq.s32.totalorder %s11, 0
      %p78 = por %p76, %p77
      %p79 = scmp.ne.s32.totalorder %s68, %s71
      %p80 = scmp.eq.s32.totalorder %s16, 1
      %p81 = por %p79, %p80
      %p82 = scmp.ne.s32.totalorder %s71, %s72
      %p83 = scmp.eq.s32.totalorder %s16, 0
      %p84 = por %p82, %p83
      %p85 = scmp.ne.s32.totalorder %s71, %s72
      %p86 = scmp.eq.s32.totalorder %s17, 1
      %p87 = por %p85, %p86
      %p89 = scmp.ne.s32.totalorder %s72, %s88
      %p90 = scmp.eq.s32.totalorder %s17, 0
      %p91 = por %p89, %p90
      %p92 = scmp.le.s32.totalorder 1, %s11
      %p93 = scmp.lt.s32.totalorder %s11, 3
      %p94 = pnand %p92, %p93
      %p95 = pneg %p94
      // Predicated region
      $region9: #{head_forward.1} parent=5 // pred_check
        _
      $region10: #{head_forward.1} parent=5 // pred_check_branch
        %97 = sbr.rel (%p94) target = $region12
      $region11: #{head_forward.1} parent=5 // pred_region
        %s98 = ssub.s32 %s11, 1
        // Predicated region
        $region13: #{head_forward.1} parent=11 // pred_check
          %p99 = pneg %p58
        $region14: #{head_forward.1} parent=11 // pred_check_branch
          %101 = sbr.rel (%p99) target = $region16
        $region15: #{head_forward.1} parent=11 // pred_region
          _
        $region16: #{head_forward.1} parent=11 // pred_fallthru
          _
      $region12: #{head_forward.1} parent=5 // pred_fallthru
        _
      %p102 = scmp.lt.s32.totalorder %s11, 2
      // Predicated region
      $region17: #{head_forward.1} parent=5 // pred_check
        %p103 = pneg %p102
      $region18: #{head_forward.1} parent=5 // pred_check_branch
        %105 = sbr.rel (%p103) target = $region20
      $region19: #{head_forward.1} parent=5 // pred_region
        // Predicated region
        $region21: #{head_forward.1} parent=19 // pred_check
          %p106 = pneg %p31
        $region22: #{head_forward.1} parent=19 // pred_check_branch
          %108 = sbr.rel (%p106) target = $region24
        $region23: #{head_forward.1} parent=19 // pred_region
          %p109 = scmp.lt.s32.totalorder %s11, 1
          %s110 = scalar_select %p109, %s11, 1
          %s111 = smul.addr %s110, 6
          %s112 = smul.addr %s111, 4
          %s113 = scalar_lea.vmem %s0, %s112
        $region24: #{head_forward.1} parent=19 // pred_fallthru
          _
      $region20: #{head_forward.1} parent=5 // pred_fallthru
        _
      %p114 = scmp.le.s32.totalorder 1, %s11
      %p115 = scmp.lt.s32.totalorder %s11, 3
      %p116 = pnand %p114, %p115
      %p117 = pneg %p116
      // Predicated region
      $region25: #{head_forward.1} parent=5 // pred_check
        _
      $region26: #{head_forward.1} parent=5 // pred_check_branch
        %119 = sbr.rel (%p116) target = $region28
      $region27: #{head_forward.1} parent=5 // pred_region
        %s120 = ssub.s32 %s11, 1
        %p121 = scmp.lt.s32.totalorder %s16, 1
        %s122 = scalar_select %p121, %s16, 1
        %s123 = smul.addr %s122, 6
        %s124 = smul.addr %s123, 4
        %s125 = scalar_lea.vmem %s0, %s124
        %p126 = pneg %p37
        %p127 = pneg %p34
        %p128 = pneg %p58
        %p129 = pneg %p55
        %p130 = pneg %p84
        %p131 = pneg %p81
        %s132 = sand.u32 %s71, 1
        %s133 = scalar_lea.sflag [#allocation3], %s132
        %s134 = sand.u32 %s71, 1
        %s135 = smul.addr %s134, 16
        %s136 = scalar_lea.vmem [#allocation2], %s135
        %p137 = scmp.lt.s32.totalorder %s16, 1
        %s138 = scalar_select %p137, %s16, 1
        %s139 = smul.addr %s138, 6
        %s140 = smul.addr %s139, 4
        %s141 = scalar_lea.vmem %s0, %s140
        %v143 = vld [vmem:[%s141] sm:$0xff]
        %v144 = vld [vmem:[%s141 + $0x8] sm:$0xf]
        %v145 = vld [vmem:[%s141 + $0xc] sm:$0xff]
        %v146 = vld [vmem:[%s141 + $0x14] sm:$0xf]
        %v147 = vld [vmem:[%s1] sm:$0xff]
        %v148 = vld [vmem:[%s1 + $0x8] sm:$0xff]
        %v149 = vld [vmem:[%s1 + $0x10] sm:$0xff]
        %v150 = vld [vmem:[%s1 + $0x18] sm:$0xff]
        %v151 = vld [vmem:[%s1 + $0x20] sm:$0xff]
        %v152 = vld [vmem:[%s1 + $0x28] sm:$0xff]
        %v153 = vld [vmem:[%s1 + $0x30] sm:$0xff]
        %v154 = vld [vmem:[%s1 + $0x38] sm:$0xff]
        %v155 = vld [vmem:[%s1 + $0x40] sm:$0xff]
        %v156 = vld [vmem:[%s1 + $0x48] sm:$0xff]
        %v157 = vld [vmem:[%s1 + $0x50] sm:$0xff]
        %v158 = vld [vmem:[%s1 + $0x58] sm:$0xff]
        %v159 = vld [vmem:[%s1 + $0x60] sm:$0xff]
        %v160 = vld [vmem:[%s1 + $0x68] sm:$0xff]
        %v161 = vld [vmem:[%s1 + $0x70] sm:$0xff]
        %v162 = vld [vmem:[%s1 + $0x78] sm:$0xff]
        %v163 = vld [vmem:[%s1 + $0x80] sm:$0xff]
        %v164 = vld [vmem:[%s1 + $0x88] sm:$0xff]
        %v165 = vld [vmem:[%s1 + $0x90] sm:$0xff]
        %v166 = vld [vmem:[%s1 + $0x98] sm:$0xff]
        %v167 = vld [vmem:[%s1 + $0xa0] sm:$0xff]
        %v168 = vld [vmem:[%s1 + $0xa8] sm:$0xff]
        %v169 = vld [vmem:[%s1 + $0xb0] sm:$0xff]
        %v170 = vld [vmem:[%s1 + $0xb8] sm:$0xff]
        %v171 = vld [vmem:[%s1 + $0xc0] sm:$0xff]
        %v172 = vld [vmem:[%s1 + $0xc8] sm:$0xff]
        %v173 = vld [vmem:[%s1 + $0xd0] sm:$0xff]
        %v174 = vld [vmem:[%s1 + $0xd8] sm:$0xff]
        %v175 = vld [vmem:[%s1 + $0xe0] sm:$0xff]
        %v176 = vld [vmem:[%s1 + $0xe8] sm:$0xff]
        %v177 = vld [vmem:[%s1 + $0xf0] sm:$0xff]
        %v178 = vld [vmem:[%s1 + $0xf8] sm:$0xff]
        %v179 = vld [vmem:[%s1 + $0x100] sm:$0xff]
        %v180 = vld [vmem:[%s1 + $0x108] sm:$0xff]
        %v181 = vld [vmem:[%s1 + $0x110] sm:$0xff]
        %v182 = vld [vmem:[%s1 + $0x118] sm:$0xff]
        %v183 = vld [vmem:[%s1 + $0x120] sm:$0xff]
        %v184 = vld [vmem:[%s1 + $0x128] sm:$0xff]
        %v185 = vld [vmem:[%s1 + $0x130] sm:$0xff]
        %v186 = vld [vmem:[%s1 + $0x138] sm:$0xff]
        %v187 = vld [vmem:[%s1 + $0x140] sm:$0xff]
        %v188 = vld [vmem:[%s1 + $0x148] sm:$0xff]
        %v189 = vld [vmem:[%s1 + $0x150] sm:$0xff]
        %v190 = vld [vmem:[%s1 + $0x158] sm:$0xff]
        %v191 = vld [vmem:[%s1 + $0x160] sm:$0xff]
        %v192 = vld [vmem:[%s1 + $0x168] sm:$0xff]
        %v193 = vld [vmem:[%s1 + $0x170] sm:$0xff]
        %v194 = vld [vmem:[%s1 + $0x178] sm:$0xff]
        %v199 = vunpack.c.l.b16 %v143
        %v200 = vunpack.c.h.b16 %v143
        %v201 = vunpack.c.l.b16 %v144
        %v202 = vunpack.c.l.b16 %v145
        %v203 = vunpack.c.h.b16 %v145
        %v204 = vunpack.c.l.b16 %v146
        %v205 = vpack.c.b16 %v202, %v199
        %v206 = vpack.c.b16 %v203, %v200
        %v207 = vpack.c.b16 %v204, %v201
        %v259 = vunpack.c.l.b16 %v147
        %v260 = vunpack.c.h.b16 %v147
        %v261 = vunpack.c.l.b16 %v148
        %v262 = vunpack.c.h.b16 %v148
        %v263 = vunpack.c.l.b16 %v149
        %v264 = vunpack.c.h.b16 %v149
        %v265 = vunpack.c.l.b16 %v150
        %v266 = vunpack.c.h.b16 %v150
        %v267 = vunpack.c.l.b16 %v151
        %v268 = vunpack.c.h.b16 %v151
        %v269 = vunpack.c.l.b16 %v152
        %v270 = vunpack.c.h.b16 %v152
        %v271 = vunpack.c.l.b16 %v153
        %v272 = vunpack.c.h.b16 %v153
        %v273 = vunpack.c.l.b16 %v154
        %v274 = vunpack.c.h.b16 %v154
        %v275 = vunpack.c.l.b16 %v155
        %v276 = vunpack.c.h.b16 %v155
        %v277 = vunpack.c.l.b16 %v156
        %v278 = vunpack.c.h.b16 %v156
        %v279 = vunpack.c.l.b16 %v157
        %v280 = vunpack.c.h.b16 %v157
        %v281 = vunpack.c.l.b16 %v158
        %v282 = vunpack.c.h.b16 %v158
        %v283 = vunpack.c.l.b16 %v159
        %v284 = vunpack.c.h.b16 %v159
        %v285 = vunpack.c.l.b16 %v160
        %v286 = vunpack.c.h.b16 %v160
        %v287 = vunpack.c.l.b16 %v161
        %v288 = vunpack.c.h.b16 %v161
        %v289 = vunpack.c.l.b16 %v162
        %v290 = vunpack.c.h.b16 %v162
        %v291 = vunpack.c.l.b16 %v163
        %v292 = vunpack.c.h.b16 %v163
        %v293 = vunpack.c.l.b16 %v164
        %v294 = vunpack.c.h.b16 %v164
        %v295 = vunpack.c.l.b16 %v165
        %v296 = vunpack.c.h.b16 %v165
        %v297 = vunpack.c.l.b16 %v166
        %v298 = vunpack.c.h.b16 %v166
        %v299 = vunpack.c.l.b16 %v167
        %v300 = vunpack.c.h.b16 %v167
        %v301 = vunpack.c.l.b16 %v168
        %v302 = vunpack.c.h.b16 %v168
        %v303 = vunpack.c.l.b16 %v169
        %v304 = vunpack.c.h.b16 %v169
        %v305 = vunpack.c.l.b16 %v170
        %v306 = vunpack.c.h.b16 %v170
        %v307 = vunpack.c.l.b16 %v171
        %v308 = vunpack.c.h.b16 %v171
        %v309 = vunpack.c.l.b16 %v172
        %v310 = vunpack.c.h.b16 %v172
        %v311 = vunpack.c.l.b16 %v173
        %v312 = vunpack.c.h.b16 %v173
        %v313 = vunpack.c.l.b16 %v174
        %v314 = vunpack.c.h.b16 %v174
        %v315 = vunpack.c.l.b16 %v175
        %v316 = vunpack.c.h.b16 %v175
        %v317 = vunpack.c.l.b16 %v176
        %v318 = vunpack.c.h.b16 %v176
        %v319 = vunpack.c.l.b16 %v177
        %v320 = vunpack.c.h.b16 %v177
        %v321 = vunpack.c.l.b16 %v178
        %v322 = vunpack.c.h.b16 %v178
        %v323 = vunpack.c.l.b16 %v179
        %v324 = vunpack.c.h.b16 %v179
        %v325 = vunpack.c.l.b16 %v180
        %v326 = vunpack.c.h.b16 %v180
        %v327 = vunpack.c.l.b16 %v181
        %v328 = vunpack.c.h.b16 %v181
        %v329 = vunpack.c.l.b16 %v182
        %v330 = vunpack.c.h.b16 %v182
        %v331 = vunpack.c.l.b16 %v183
        %v332 = vunpack.c.h.b16 %v183
        %v333 = vunpack.c.l.b16 %v184
        %v334 = vunpack.c.h.b16 %v184
        %v335 = vunpack.c.l.b16 %v185
        %v336 = vunpack.c.h.b16 %v185
        %v337 = vunpack.c.l.b16 %v186
        %v338 = vunpack.c.h.b16 %v186
        %v339 = vunpack.c.l.b16 %v187
        %v340 = vunpack.c.h.b16 %v187
        %v341 = vunpack.c.l.b16 %v188
        %v342 = vunpack.c.h.b16 %v188
        %v343 = vunpack.c.l.b16 %v189
        %v344 = vunpack.c.h.b16 %v189
        %v345 = vunpack.c.l.b16 %v190
        %v346 = vunpack.c.h.b16 %v190
        %v347 = vunpack.c.l.b16 %v191
        %v348 = vunpack.c.h.b16 %v191
        %v349 = vunpack.c.l.b16 %v192
        %v350 = vunpack.c.h.b16 %v192
        %v351 = vunpack.c.l.b16 %v193
        %v352 = vunpack.c.h.b16 %v193
        %v353 = vunpack.c.l.b16 %v194
        %v354 = vunpack.c.h.b16 %v194
        %v355 = vpack.c.b16 %v261, %v259
        %v356 = vpack.c.b16 %v262, %v260
        %v357 = vpack.c.b16 %v265, %v263
        %v358 = vpack.c.b16 %v266, %v264
        %v359 = vpack.c.b16 %v269, %v267
        %v360 = vpack.c.b16 %v270, %v268
        %v361 = vpack.c.b16 %v273, %v271
        %v362 = vpack.c.b16 %v274, %v272
        %v363 = vpack.c.b16 %v277, %v275
        %v364 = vpack.c.b16 %v278, %v276
        %v365 = vpack.c.b16 %v281, %v279
        %v366 = vpack.c.b16 %v282, %v280
        %v367 = vpack.c.b16 %v285, %v283
        %v368 = vpack.c.b16 %v286, %v284
        %v369 = vpack.c.b16 %v289, %v287
        %v370 = vpack.c.b16 %v290, %v288
        %v371 = vpack.c.b16 %v293, %v291
        %v372 = vpack.c.b16 %v294, %v292
        %v373 = vpack.c.b16 %v297, %v295
        %v374 = vpack.c.b16 %v298, %v296
        %v375 = vpack.c.b16 %v301, %v299
        %v376 = vpack.c.b16 %v302, %v300
        %v377 = vpack.c.b16 %v305, %v303
        %v378 = vpack.c.b16 %v306, %v304
        %v379 = vpack.c.b16 %v309, %v307
        %v380 = vpack.c.b16 %v310, %v308
        %v381 = vpack.c.b16 %v313, %v311
        %v382 = vpack.c.b16 %v314, %v312
        %v383 = vpack.c.b16 %v317, %v315
        %v384 = vpack.c.b16 %v318, %v316
        %v385 = vpack.c.b16 %v321, %v319
        %v386 = vpack.c.b16 %v322, %v320
        %v387 = vpack.c.b16 %v325, %v323
        %v388 = vpack.c.b16 %v326, %v324
        %v389 = vpack.c.b16 %v329, %v327
        %v390 = vpack.c.b16 %v330, %v328
        %v391 = vpack.c.b16 %v333, %v331
        %v392 = vpack.c.b16 %v334, %v332
        %v393 = vpack.c.b16 %v337, %v335
        %v394 = vpack.c.b16 %v338, %v336
        %v395 = vpack.c.b16 %v341, %v339
        %v396 = vpack.c.b16 %v342, %v340
        %v397 = vpack.c.b16 %v345, %v343
        %v398 = vpack.c.b16 %v346, %v344
        %v399 = vpack.c.b16 %v349, %v347
        %v400 = vpack.c.b16 %v350, %v348
        %v401 = vpack.c.b16 %v353, %v351
        %v402 = vpack.c.b16 %v354, %v352
        %451 = vmatprep.subr.bf16.mxu0 %v370
        %452 = vmatpush1.bf16.msra.mxu0 %v369
        %453 = vmatprep.subr.bf16.mxu0 %v368
        %454 = vmatpush1.bf16.msra.mxu0 %v367
        %455 = vmatprep.subr.bf16.mxu0 %v366
        %456 = vmatpush1.bf16.msra.mxu0 %v365
        %457 = vmatprep.subr.bf16.mxu0 %v364
        %458 = vmatpush1.bf16.msra.mxu0 %v363
        %459 = vmatprep.subr.bf16.mxu0 %v362
        %460 = vmatpush1.bf16.msra.mxu0 %v361
        %461 = vmatprep.subr.bf16.mxu0 %v360
        %462 = vmatpush1.bf16.msra.mxu0 %v359
        %463 = vmatprep.subr.bf16.mxu0 %v358
        %464 = vmatpush1.bf16.msra.mxu0 %v357
        %465 = vmatprep.subr.bf16.mxu0 %v356
        %466 = vmatpush1.bf16.msra.mxu0 %v355
        %467 = vmatprep.subr.bf16.mxu0 %v386
        %468 = vmatpush2.bf16.msra.mxu0 %v385
        %469 = vmatprep.subr.bf16.mxu0 %v384
        %470 = vmatpush2.bf16.msra.mxu0 %v383
        %471 = vmatprep.subr.bf16.mxu0 %v382
        %472 = vmatpush2.bf16.msra.mxu0 %v381
        %473 = vmatprep.subr.bf16.mxu0 %v380
        %474 = vmatpush2.bf16.msra.mxu0 %v379
        %475 = vmatprep.subr.bf16.mxu0 %v378
        %476 = vmatpush2.bf16.msra.mxu0 %v377
        %477 = vmatprep.subr.bf16.mxu0 %v376
        %478 = vmatpush2.bf16.msra.mxu0 %v375
        %479 = vmatprep.subr.bf16.mxu0 %v374
        %480 = vmatpush2.bf16.msra.mxu0 %v373
        %481 = vmatprep.subr.bf16.mxu0 %v372
        %482 = vmatpush2.bf16.msra.mxu0 %v371
        %483 = vmatprep.mubr.bf16.mxu0 %v206
        %484 = vmatmul.mubr.bf16.gmra.mxu0 %v205
        %v485 = vpop.f32.mrf.mxu0
        %v486 = vadd.f32 0.0, %v485
        %v487 = vpop.f32.mrf.mxu0
        %v488 = vadd.f32 0.0, %v487
        %v489 = vpop.f32.mrf.mxu0
        %v490 = vadd.f32 0.0, %v489
        %v491 = vpop.f32.mrf.mxu0
        %v492 = vadd.f32 0.0, %v491
        %493 = vdwg.mxu0
        %494 = vmatprep.subr.bf16.mxu0 %v402
        %495 = vmatpush1.bf16.msra.mxu0 %v401
        %496 = vmatprep.subr.bf16.mxu0 %v400
        %497 = vmatpush1.bf16.msra.mxu0 %v399
        %498 = vmatprep.subr.bf16.mxu0 %v398
        %499 = vmatpush1.bf16.msra.mxu0 %v397
        %500 = vmatprep.subr.bf16.mxu0 %v396
        %501 = vmatpush1.bf16.msra.mxu0 %v395
        %502 = vmatprep.subr.bf16.mxu0 %v394
        %503 = vmatpush1.bf16.msra.mxu0 %v393
        %504 = vmatprep.subr.bf16.mxu0 %v392
        %505 = vmatpush1.bf16.msra.mxu0 %v391
        %506 = vmatprep.subr.bf16.mxu0 %v390
        %507 = vmatpush1.bf16.msra.mxu0 %v389
        %508 = vmatprep.subr.bf16.mxu0 %v388
        %509 = vmatpush1.bf16.msra.mxu0 %v387
        %510 = vmatprep.subr.bf16.mxu0 0
        %511 = vmatpush2.bf16.msra.mxu0 0
        %512 = vmatprep.subr.bf16.mxu0 0
        %513 = vmatpush2.bf16.msra.mxu0 0
        %514 = vmatprep.subr.bf16.mxu0 0
        %515 = vmatpush2.bf16.msra.mxu0 0
        %516 = vmatprep.subr.bf16.mxu0 0
        %517 = vmatpush2.bf16.msra.mxu0 0
        %518 = vmatprep.subr.bf16.mxu0 0
        %519 = vmatpush2.bf16.msra.mxu0 0
        %520 = vmatprep.subr.bf16.mxu0 0
        %521 = vmatpush2.bf16.msra.mxu0 0
        %522 = vmatprep.subr.bf16.mxu0 0
        %523 = vmatpush2.bf16.msra.mxu0 0
        %524 = vmatprep.subr.bf16.mxu0 0
        %525 = vmatpush2.bf16.msra.mxu0 0
        %526 = vmatprep.mubr.bf16.mxu0 0
        %527 = vmatmul.mubr.bf16.gmra.mxu0 %v207
        %v528 = vpop.f32.mrf.mxu0
        %v529 = vadd.f32 %v486, %v528
        %v530 = vpop.f32.mrf.mxu0
        %v531 = vadd.f32 %v488, %v530
        %v532 = vpop.f32.mrf.mxu0
        %v533 = vadd.f32 %v490, %v532
        %v534 = vpop.f32.mrf.mxu0
        %v535 = vadd.f32 %v492, %v534
        %536 = vdwg.mxu0
        %v537 = vpack.c.bf16 %v533, %v529
        %v538 = vpack.c.bf16 %v535, %v531
        %540 = vrot.lane.b32.xlu0 %v537, 64
        %v541 = vpop.permute.xlu0 %540
        %vm542 = vcmask 523264
        %v544 = vsel %vm542, %v541, 0
        %v547 = vsel %vm542, %v537, 0
        %549 = vmatprep.subr.bf16.mxu0 0
        %550 = vmatpush1.bf16.xpose.msra.mxu0 0
        %551 = vmatprep.subr.bf16.mxu0 0
        %552 = vmatpush1.bf16.xpose.msra.mxu0 0
        %553 = vmatprep.subr.bf16.mxu0 0
        %554 = vmatpush1.bf16.xpose.msra.mxu0 0
        %555 = vmatprep.subr.bf16.mxu0 0
        %556 = vmatpush1.bf16.xpose.msra.mxu0 0
        %557 = vmatprep.subr.bf16.mxu0 0
        %558 = vmatpush1.bf16.xpose.msra.mxu0 0
        %559 = vmatprep.subr.bf16.mxu0 0
        %560 = vmatpush1.bf16.xpose.msra.mxu0 0
        %561 = vmatprep.subr.bf16.mxu0 0
        %562 = vmatpush1.bf16.xpose.msra.mxu0 0
        %563 = vmatprep.subr.bf16.mxu0 0
        %564 = vmatpush1.bf16.xpose.msra.mxu0 %v547
        %565 = vmatprep.subr.bf16.mxu0 0
        %566 = vmatpush2.bf16.xpose.msra.mxu0 0
        %567 = vmatprep.subr.bf16.mxu0 0
        %568 = vmatpush2.bf16.xpose.msra.mxu0 0
        %569 = vmatprep.subr.bf16.mxu0 0
        %570 = vmatpush2.bf16.xpose.msra.mxu0 0
        %571 = vmatprep.subr.bf16.mxu0 0
        %572 = vmatpush2.bf16.xpose.msra.mxu0 0
        %573 = vmatprep.subr.bf16.mxu0 0
        %574 = vmatpush2.bf16.xpose.msra.mxu0 0
        %575 = vmatprep.subr.bf16.mxu0 0
        %576 = vmatpush2.bf16.xpose.msra.mxu0 0
        %577 = vmatprep.subr.bf16.mxu0 0
        %578 = vmatpush2.bf16.xpose.msra.mxu0 0
        %579 = vmatprep.subr.bf16.mxu0 0
        %580 = vmatpush2.bf16.xpose.msra.mxu0 0
        %581 = vmatprep.mubr.bf16.mxu0 0
        %582 = vmatmul.mubr.bf16.gmra.mxu0 %v544
        %v583 = vpop.f32.mrf.mxu0
        %v584 = vadd.f32 0.0, %v583
        %v585 = vpop.f32.mrf.mxu0
        %v586 = vpop.f32.mrf.mxu0
        %v587 = vadd.f32 0.0, %v586
        %v588 = vpop.f32.mrf.mxu0
        %589 = vdwg.mxu0
        %v590 = vlaneseq
        %v591 = vshrl.u32 %v590, 7
        %v592 = vadd.s32 %v591, 8
        %v593 = vlaneseq
        %v594 = vand.u32 %v593, 127
        %vm595 = vcmp.le.s32.totalorder %v594, %v591
        %vm596 = vcmp.le.s32.totalorder %v594, %v592
        %v597 = vsel %vm595, %v584, -inf
        %v598 = vsel %vm596, %v587, -inf
        %vm599 = vcmask 130048
        %v600 = vsel %vm599, %v597, -inf
        %601 = vmax.xlane.f32.xlu0 %v600
        %v602 = vpop.xlane.xlu0 %601
        %v603 = vsel %vm599, %v598, -inf
        %604 = vmax.xlane.f32.xlu0 %v603
        %v605 = vpop.xlane.xlu0 %604
        %v606 = vsub.f32 %v597, %v602
        %v607 = vsub.f32 %v598, %v605
        %v608 = vmul.f32 %v606, 1.442695
        %v609 = vpow.pop %v608
        %v610 = vmul.f32 %v607, 1.442695
        %v611 = vpow.pop %v610
        %v612 = vsel %vm599, %v609, 0.0
        %613 = vadd.xlane.f32.xlu0 %v612
        %v614 = vpop.xlane.xlu0 %613
        %v615 = vsel %vm599, %v611, 0.0
        %616 = vadd.xlane.f32.xlu0 %v615
        %v617 = vpop.xlane.xlu0 %616
        %v618 = vpack.c.bf16 %v611, %v609
        %v620 = vsel %vm599, %v618, 0
        %622 = vmatprep.subr.bf16.mxu0 0
        %623 = vmatpush1.bf16.msra.mxu0 0
        %624 = vmatprep.subr.bf16.mxu0 0
        %625 = vmatpush1.bf16.msra.mxu0 0
        %626 = vmatprep.subr.bf16.mxu0 0
        %627 = vmatpush1.bf16.msra.mxu0 0
        %628 = vmatprep.subr.bf16.mxu0 0
        %629 = vmatpush1.bf16.msra.mxu0 0
        %630 = vmatprep.subr.bf16.mxu0 0
        %631 = vmatpush1.bf16.msra.mxu0 0
        %632 = vmatprep.subr.bf16.mxu0 0
        %633 = vmatpush1.bf16.msra.mxu0 0
        %634 = vmatprep.subr.bf16.mxu0 0
        %635 = vmatpush1.bf16.msra.mxu0 0
        %636 = vmatprep.subr.bf16.mxu0 0
        %637 = vmatpush1.bf16.msra.mxu0 %v538
        %638 = vmatprep.subr.bf16.mxu0 0
        %639 = vmatpush2.bf16.msra.mxu0 0
        %640 = vmatprep.subr.bf16.mxu0 0
        %641 = vmatpush2.bf16.msra.mxu0 0
        %642 = vmatprep.subr.bf16.mxu0 0
        %643 = vmatpush2.bf16.msra.mxu0 0
        %644 = vmatprep.subr.bf16.mxu0 0
        %645 = vmatpush2.bf16.msra.mxu0 0
        %646 = vmatprep.subr.bf16.mxu0 0
        %647 = vmatpush2.bf16.msra.mxu0 0
        %648 = vmatprep.subr.bf16.mxu0 0
        %649 = vmatpush2.bf16.msra.mxu0 0
        %650 = vmatprep.subr.bf16.mxu0 0
        %651 = vmatpush2.bf16.msra.mxu0 0
        %652 = vmatprep.subr.bf16.mxu0 0
        %653 = vmatpush2.bf16.msra.mxu0 0
        %654 = vmatprep.mubr.bf16.mxu0 0
        %655 = vmatmul.mubr.bf16.gmra.mxu0 %v620
        %v656 = vpop.f32.mrf.mxu0
        %v657 = vadd.f32 0.0, %v656
        %v658 = vpop.f32.mrf.mxu0
        %v659 = vpop.f32.mrf.mxu0
        %v660 = vadd.f32 0.0, %v659
        %v661 = vpop.f32.mrf.mxu0
        %662 = vdwg.mxu0
        %v663 = vrcp.pop %v614
        %v664 = vrcp.pop %v617
        %v665 = vmul.f32 %v657, %v663
        %v666 = vmul.f32 %v660, %v664
        %667 = vst.msk [vmem:[%s136] sm:$0xff] %vm542, %v665
        %668 = vst.msk [vmem:[%s136 + $0x8] sm:$0xff] %vm542, %v666
        %s669 = sand.u32 %s71, 1
        %s670 = scalar_lea.sflag [#allocation3], %s669
        %s671 = sand.u32 %s71, 1
        %s672 = smul.addr %s671, 16
        %s673 = scalar_lea.vmem [#allocation2], %s672
        // Predicated region
        $region29: #{head_forward.1} parent=27 // pred_check
          %p674 = pneg %p81
        $region30: #{head_forward.1} parent=27 // pred_check_branch
          %676 = sbr.rel (%p674) target = $region32
        $region31: #{head_forward.1} parent=27 // pred_region
          %s678 = ssub.s32 256, 256
          %679 = vsyncadd %s670, %s678
          %s680 = smul.addr %s16, 2
          %s681 = smul.addr %s680, 128
          %s682 = scalar_lea.hbm %s2, %s681
          %s683 = sshll.u32 %s673, 4
          %s684 = int_to_ptr.vmem [resolvable:$true] %s683
          %689 = dma.vmem_to_hbm [thread:$0]  %s684, 256, %s682, %s670, 128, 128, 8
        $region32: #{head_forward.1} parent=27 // pred_fallthru
          _
      $region28: #{head_forward.1} parent=5 // pred_fallthru
        _
      %p690 = scmp.le.s32.totalorder 2, %s11
      // Predicated region
      $region33: #{head_forward.1} parent=5 // pred_check
        %p691 = pneg %p690
      $region34: #{head_forward.1} parent=5 // pred_check_branch
        %693 = sbr.rel (%p691) target = $region36
      $region35: #{head_forward.1} parent=5 // pred_region
        %s694 = ssub.s32 %s11, 2
        // Predicated region
        $region37: #{head_forward.1} parent=35 // pred_check
          %p695 = pneg %p87
        $region38: #{head_forward.1} parent=35 // pred_check_branch
          %697 = sbr.rel (%p695) target = $region40
        $region39: #{head_forward.1} parent=35 // pred_region
          %s698 = sand.u32 %s72, 1
          %s699 = scalar_lea.sflag [#allocation3], %s698
          %s700 = sand.u32 %s72, 1
          %s701 = smul.addr %s700, 16
          %s702 = scalar_lea.vmem [#allocation2], %s701
          %703 = dma.done %s699, 256
        $region40: #{head_forward.1} parent=35 // pred_fallthru
          _
      $region36: #{head_forward.1} parent=5 // pred_fallthru
        _
    $region6: #{head_forward.1} parent=1 // loop_footer
      %s15 = sadd.s32 1, %s11
    $region7: #{head_forward.1} parent=1 // loop_footer_branch
      %10 = sbr.rel target = $region3
    $region8: #{head_forward.1} parent=1 // loop_exit
      _
    %704 = vsyncpa [#allocation3], 1
    %s705 = scalar_lea.sflag [#allocation3], 1
    %706 = vsyncpa %s705, 1

</llo_original>
